<compile_context>
chip_gen: v7x
topology: tpu7x:2x2x1
jax: 0.10.0
libtpu: 0.0.40
codegen_flags: <defaults>
</compile_context>

<pallas_src>
import jax
import jax.numpy as jnp
from jax import lax
from jax.experimental import pallas as pl
from jax.experimental.pallas import tpu as pltpu


def _round_up(x: int, m: int) -> int:
    return (x + m - 1) // m * m


def feedforward_kernel(x1_ref, x2_ref, w1a_ref, w1b_ref, b1_ref, w2_ref, b2_ref, o_ref):
    """One batch tile: sigmoid(relu([x1|x2] @ W1^T + b1) @ W2^T + b2).

    x1_ref : [TILE_N, 2H]   first half of the concatenated input
    x2_ref : [TILE_N, 2H]   second half
    w1a_ref: [4H, 2H]       fc1.weight[:, :2H]   (PyTorch [out, in] layout)
    w1b_ref: [4H, 2H]       fc1.weight[:, 2H:]
    b1_ref : [1, 4H]        fc1.bias
    w2_ref : [1, 4H]        fc2.weight           (PyTorch [out, in] layout)
    b2_ref : [1]            fc2.bias (SMEM scalar)
    o_ref  : [1, TILE_N]    lane-dense output row for this tile
    """
    # fc1: contract on the weights' second ("in") axis so the original PyTorch
    # [out, in] layout is consumed directly (no transposed weight copy in HBM).
    dn = (((1,), (1,)), ((), ()))
    h = lax.dot_general(x1_ref[...], w1a_ref[...], dn,
                        preferred_element_type=jnp.float32)
    h = h + lax.dot_general(x2_ref[...], w1b_ref[...], dn,
                            preferred_element_type=jnp.float32)
    h = jnp.maximum(h + b1_ref[...], 0.0)  # ReLU

    # TODO(synk): dropout(p=0.25) is identity in eval mode; training-mode masking
    # (pltpu.prng_random_bits) is intentionally omitted.

    # fc2 has a single output feature: VPU multiply + lane reduction instead of a
    # degenerate 1-wide MXU matmul; emit the tile's result lane-dense.
    y = jnp.sum(h * w2_ref[...], axis=1) + b2_ref[0]      # [TILE_N]
    o_ref[...] = jax.nn.sigmoid(y)[None, :]               # [1, TILE_N]


def feedforward(input1, input2, w1, b1, w2, b2, *, tile_n=1024):
    """JAX wrapper matching FeedForward.forward semantics (eval mode).

    input1, input2: [N, 2H] float32
    w1: [4H, 4H]  (PyTorch [out, in])   b1: [4H]
    w2: [1, 4H]   (PyTorch [out, in])   b2: [1]
    returns: [N] float32
    """
    input1 = jnp.asarray(input1, jnp.float32)
    input2 = jnp.asarray(input2, jnp.float32)
    n, d2 = input1.shape
    d4 = w1.shape[0]
    assert input2.shape == (n, d2)
    assert w1.shape == (d4, 2 * d2) and b1.shape == (d4,)
    assert w2.shape == (1, d4) and b2.shape == (1,)

    # Batch tile: multiple of 128 (keeps the output row lane-dense), clamped so tiny
    # batches are not over-padded.  1024 rows x 128 padded lanes x 4 B = 0.5 MiB per
    # input buffer -> double-buffered footprint stays far below v7x's 64 MiB VMEM.
    tile_n = max(128, min(_round_up(tile_n, 128), _round_up(n, 128)))
    n_pad = _round_up(n, tile_n)
    if n_pad != n:
        pad = ((0, n_pad - n), (0, 0))
        input1 = jnp.pad(input1, pad)
        input2 = jnp.pad(input2, pad)
    num_tiles = n_pad // tile_n

    w1a = w1[:, :d2]              # [4H, 2H] half acting on input1
    w1b = w1[:, d2:]              # [4H, 2H] half acting on input2
    b1_row = b1.reshape(1, d4)    # [1, 4H]

    grid_spec = pltpu.PrefetchScalarGridSpec(
        num_scalar_prefetch=0,
        grid=(num_tiles,),
        in_specs=[
            pl.BlockSpec((tile_n, d2), lambda i: (i, 0)),        # input1 tile (pipelined)
            pl.BlockSpec((tile_n, d2), lambda i: (i, 0)),        # input2 tile (pipelined)
            pl.BlockSpec((d4, d2), lambda i: (0, 0)),            # W1 left half (grid-invariant)
            pl.BlockSpec((d4, d2), lambda i: (0, 0)),            # W1 right half (grid-invariant)
            pl.BlockSpec((1, d4), lambda i: (0, 0)),             # b1 (grid-invariant)
            pl.BlockSpec((1, d4), lambda i: (0, 0)),             # W2 row (grid-invariant)
            pl.BlockSpec(memory_space=pltpu.MemorySpace.SMEM),   # b2 scalar in SMEM
        ],
        out_specs=pl.BlockSpec((1, tile_n), lambda i: (0, i)),   # lane-dense row per tile
    )

    out = pl.pallas_call(
        feedforward_kernel,
        out_shape=jax.ShapeDtypeStruct((1, n_pad), jnp.float32),
        grid_spec=grid_spec,
        compiler_params=pltpu.CompilerParams(
            dimension_semantics=("parallel",),   # independent batch tiles -> both v7x TCs
        ),
    )(input1, input2, w1a, w1b, b1_row, w2, b2)

    return out.reshape(-1)[:n]    # view(-1), drop batch padding


def _reference(input1, input2, w1, b1, w2, b2):
    x = jnp.concatenate((input1, input2), axis=1)
    h = jnp.maximum(jnp.dot(x, w1.T, precision=lax.Precision.HIGHEST) + b1, 0.0)
    y = jnp.dot(h, w2.T, precision=lax.Precision.HIGHEST) + b2
    return jax.nn.sigmoid(y).reshape(-1)


if __name__ == "__main__":
    # hidden_dim = 8  ->  fc1: Linear(32, 32), fc2: Linear(32, 1)
    hidden_dim = 8
    d4 = hidden_dim * 4
    d2 = hidden_dim * 2

    key = jax.random.PRNGKey(0)
    k1, k2, k3, k4, k5, k6, k7, k8 = jax.random.split(key, 8)

    bound = 1.0 / jnp.sqrt(d4)
    w1 = jax.random.uniform(k1, (d4, d4), jnp.float32, -bound, bound)   # fc1.weight [out, in]
    b1 = jax.random.uniform(k2, (d4,), jnp.float32, -bound, bound)      # fc1.bias
    w2 = jax.random.uniform(k3, (1, d4), jnp.float32, -bound, bound)    # fc2.weight [out, in]
    b2 = jax.random.uniform(k4, (1,), jnp.float32, -bound, bound)       # fc2.bias

    # Case 1: small batch (single tile; 16 rows padded to 128).
    n1 = 16
    a1 = jax.random.normal(k5, (n1, d2), jnp.float32)
    a2 = jax.random.normal(k6, (n1, d2), jnp.float32)
    out1 = feedforward(a1, a2, w1, b1, w2, b2)
    jax.block_until_ready(out1)
    ref1 = _reference(a1, a2, w1, b1, w2, b2)
    assert out1.shape == (n1,), out1.shape
    assert jnp.allclose(out1, ref1, atol=1e-4, rtol=1e-4)
    assert bool(jnp.all((out1 >= 0.0) & (out1 <= 1.0)))

    # Case 2: multi-tile grid with a ragged tail (200 rows, TILE_N=128 -> 2 tiles).
    n2 = 200
    c1 = jax.random.normal(k7, (n2, d2), jnp.float32)
    c2 = jax.random.normal(k8, (n2, d2), jnp.float32)
    out2 = feedforward(c1, c2, w1, b1, w2, b2, tile_n=128)
    jax.block_until_ready(out2)
    ref2 = _reference(c1, c2, w1, b1, w2, b2)
    assert out2.shape == (n2,), out2.shape
    assert jnp.allclose(out2, ref2, atol=1e-4, rtol=1e-4)

    print("KERNEL_OK")
</pallas_src>

<mosaic_0001>
module attributes {stable_mosaic.version = 11 : i64} {
  func.func @feedforward_kernel(%arg0: i32, %arg1: memref<128x16xf32, #tpu.memory_space<vmem>>, %arg2: memref<128x16xf32, #tpu.memory_space<vmem>>, %arg3: memref<32x16xf32, #tpu.memory_space<vmem>>, %arg4: memref<32x16xf32, #tpu.memory_space<vmem>>, %arg5: memref<1x32xf32, #tpu.memory_space<vmem>>, %arg6: memref<1x32xf32, #tpu.memory_space<vmem>>, %arg7: memref<1xf32, #tpu.memory_space<smem>>, %arg8: memref<1x128xf32, #tpu.memory_space<vmem>>) attributes {dimension_semantics = [#tpu.dimension_semantics<parallel>], iteration_bounds = array<i64: 1>, scalar_prefetch = 0 : i64, scratch_operands = 0 : i64, tpu.core_type = #tpu.core_type<tc>, window_params = [{transform_indices = @transform_0, window_bounds = array<i64: 128, 16>}, {transform_indices = @transform_1, window_bounds = array<i64: 128, 16>}, {pipeline_mode = #tpu.pipeline_mode<synchronous>, transform_indices = @transform_2, window_bounds = array<i64: 32, 16>}, {pipeline_mode = #tpu.pipeline_mode<synchronous>, transform_indices = @transform_3, window_bounds = array<i64: 32, 16>}, {pipeline_mode = #tpu.pipeline_mode<synchronous>, transform_indices = @transform_4, window_bounds = array<i64: 1, 32>}, {pipeline_mode = #tpu.pipeline_mode<synchronous>, transform_indices = @transform_5, window_bounds = array<i64: 1, 32>}, {transform_indices = @transform_6, window_bounds = array<i64: 1>}, {transform_indices = @transform_7, window_bounds = array<i64: 1, 128>}]} {
    %c0 = arith.constant 0 : index
    %c0_0 = arith.constant 0 : index
    %0 = vector.load %arg1[%c0, %c0_0] : memref<128x16xf32, #tpu.memory_space<vmem>>, vector<128x16xf32>
    %c0_1 = arith.constant 0 : index
    %c0_2 = arith.constant 0 : index
    %1 = vector.load %arg3[%c0_1, %c0_2] : memref<32x16xf32, #tpu.memory_space<vmem>>, vector<32x16xf32>
    %cst = arith.constant dense<0.000000e+00> : vector<128x32xf32>
    %2 = tpu.matmul %0, %1, %cst {dimension_numbers = #tpu.dot_dimension_numbers<[1], [1], [0], [0], [0, 0, 1, 0], [], []>} : vector<128x16xf32>, vector<32x16xf32>, vector<128x32xf32> -> vector<128x32xf32>
    %c0_3 = arith.constant 0 : index
    %c0_4 = arith.constant 0 : index
    %3 = vector.load %arg2[%c0_3, %c0_4] : memref<128x16xf32, #tpu.memory_space<vmem>>, vector<128x16xf32>
    %c0_5 = arith.constant 0 : index
    %c0_6 = arith.constant 0 : index
    %4 = vector.load %arg4[%c0_5, %c0_6] : memref<32x16xf32, #tpu.memory_space<vmem>>, vector<32x16xf32>
    %cst_7 = arith.constant dense<0.000000e+00> : vector<128x32xf32>
    %5 = tpu.matmul %3, %4, %cst_7 {dimension_numbers = #tpu.dot_dimension_numbers<[1], [1], [0], [0], [0, 0, 1, 0], [], []>} : vector<128x16xf32>, vector<32x16xf32>, vector<128x32xf32> -> vector<128x32xf32>
    %6 = arith.addf %2, %5 : vector<128x32xf32>
    %c0_8 = arith.constant 0 : index
    %c0_9 = arith.constant 0 : index
    %7 = vector.load %arg5[%c0_8, %c0_9] : memref<1x32xf32, #tpu.memory_space<vmem>>, vector<1x32xf32>
    %8 = vector.broadcast %7 : vector<1x32xf32> to vector<128x32xf32>
    %9 = arith.addf %6, %8 : vector<128x32xf32>
    %cst_10 = arith.constant 0.000000e+00 : f32
    %10 = vector.broadcast %cst_10 : f32 to vector<128x32xf32>
    %11 = arith.maximumf %9, %10 : vector<128x32xf32>
    %c0_11 = arith.constant 0 : index
    %c0_12 = arith.constant 0 : index
    %12 = vector.load %arg6[%c0_11, %c0_12] : memref<1x32xf32, #tpu.memory_space<vmem>>, vector<1x32xf32>
    %13 = vector.broadcast %12 : vector<1x32xf32> to vector<128x32xf32>
    %14 = arith.mulf %11, %13 : vector<128x32xf32>
    %cst_13 = arith.constant dense<0.000000e+00> : vector<128xf32>
    %15 = vector.multi_reduction <add>, %14, %cst_13 [1] : vector<128x32xf32> to vector<128xf32>
    %c0_14 = arith.constant 0 : index
    %16 = memref.load %arg7[%c0_14] : memref<1xf32, #tpu.memory_space<smem>>
    %17 = vector.broadcast %16 : f32 to vector<128xf32>
    %18 = arith.addf %15, %17 : vector<128xf32>
    %19 = arith.negf %18 : vector<128xf32>
    %20 = math.exp %19 : vector<128xf32>
    %cst_15 = arith.constant 1.000000e+00 : f32
    %21 = vector.broadcast %cst_15 : f32 to vector<128xf32>
    %22 = arith.addf %21, %20 : vector<128xf32>
    %23 = arith.divf %21, %22 : vector<128xf32>
    %24 = vector.shape_cast %23 : vector<128xf32> to vector<1x128xf32>
    %c0_16 = arith.constant 0 : index
    %c0_17 = arith.constant 0 : index
    %25 = vector.load %arg8[%c0_16, %c0_17] : memref<1x128xf32, #tpu.memory_space<vmem>>, vector<1x128xf32>
    tpu.vector_store %arg8[%c0_16, %c0_17], %24 {strides = array<i32>} : memref<1x128xf32, #tpu.memory_space<vmem>>, vector<1x128xf32>,
    return
  }
  func.func @transform_0(%arg0: i32) -> (i32, i32) {
    %c0_i32 = arith.constant 0 : i32
    %c0_i32_0 = arith.constant 0 : i32
    return %arg0, %c0_i32 : i32, i32
  }
  func.func @transform_1(%arg0: i32) -> (i32, i32) {
    %c0_i32 = arith.constant 0 : i32
    %c0_i32_0 = arith.constant 0 : i32
    return %arg0, %c0_i32 : i32, i32
  }
  func.func @transform_2(%arg0: i32) -> (i32, i32) {
    %c0_i32 = arith.constant 0 : i32
    %c0_i32_0 = arith.constant 0 : i32
    %c0_i32_1 = arith.constant 0 : i32
    return %c0_i32, %c0_i32_0 : i32, i32
  }
  func.func @transform_3(%arg0: i32) -> (i32, i32) {
    %c0_i32 = arith.constant 0 : i32
    %c0_i32_0 = arith.constant 0 : i32
    %c0_i32_1 = arith.constant 0 : i32
    return %c0_i32, %c0_i32_0 : i32, i32
  }
  func.func @transform_4(%arg0: i32) -> (i32, i32) {
    %c0_i32 = arith.constant 0 : i32
    %c0_i32_0 = arith.constant 0 : i32
    %c0_i32_1 = arith.constant 0 : i32
    return %c0_i32, %c0_i32_0 : i32, i32
  }
  func.func @transform_5(%arg0: i32) -> (i32, i32) {
    %c0_i32 = arith.constant 0 : i32
    %c0_i32_0 = arith.constant 0 : i32
    %c0_i32_1 = arith.constant 0 : i32
    return %c0_i32, %c0_i32_0 : i32, i32
  }
  func.func @transform_6(%arg0: i32) -> i32 {
    %c0_i32 = arith.constant 0 : i32
    %c0_i32_0 = arith.constant 0 : i32
    return %c0_i32 : i32
  }
  func.func @transform_7(%arg0: i32) -> (i32, i32) {
    %c0_i32 = arith.constant 0 : i32
    %c0_i32_0 = arith.constant 0 : i32
    return %c0_i32, %arg0 : i32, i32
  }
}

</mosaic_0001>

<llo_original>
// kernel: tpu_custom_call.1
$region0: #{tpu_custom_call.1}
  #allocation0 [shape = 'u32[]', space=smem, size = 0x4, offset = 0x4, fixed_abs, tag = 'smem constant byte address 0x4 - core index']
  #allocation1 [shape = 'u32[144,128]{1,0:T(1,128)}', space=vmem, size = 0x12000, scoped, tag = 'internal scratch']
  #allocation2 [shape = 'f32[1]{0:T(128)S(6)}', space=smem, size = 0x200, scoped, tag = 'scoped memory for tpu_custom_call.1']
  %s0 = inlined_call_operand.vmem [shape: f32[128,16], index: 0, kind: input, shape index: {}]
  %s1 = inlined_call_operand.vmem [shape: f32[128,16], index: 1, kind: input, shape index: {}]
  %s2 = inlined_call_operand.vmem [shape: f32[32,16], index: 2, kind: input, shape index: {}]
  %s3 = inlined_call_operand.vmem [shape: f32[32,16], index: 3, kind: input, shape index: {}]
  %s4 = inlined_call_operand.vmem [shape: f32[1,32], index: 4, kind: input, shape index: {}]
  %s5 = inlined_call_operand.vmem [shape: f32[1,32], index: 5, kind: input, shape index: {}]
  %s6 = inlined_call_operand.<no memory space> [shape: f32[1], index: 6, kind: input, shape index: {}]
  %s7 = inlined_call_operand.hbm [shape: f32[1,128], index: 7, kind: output, shape index: {}]
  %s8 = sld [smem:[#allocation0]]
  $region38: #{tpu_custom_call.1} parent=0
    _
  %s10 = ssub.s32 1, %s8
  %s11 = scalar_select 0, %s10, %s8
  %12 = sst [smem:[#allocation2]] %s6
  $region1: #{tpu_custom_call.1} parent=0
    #allocation3 [shape = 'u8[512]{0}', space=vmem, size = 0x400, scoped, tag = 'output window, operand 0, single buffered']
    #allocation4 [shape = 's32[1]{0}', space=sflag, size = 0x4, scoped, tag = 'scoped memory for tpu_custom_call.1']
    %13 = vsyncpa [#allocation4], 0
    // Predicated region
    $region2: #{tpu_custom_call.1} parent=1 // pred_check
      _
    $region3: #{tpu_custom_call.1} parent=1 // pred_check_branch
      %15 = sbr.rel (0) target = $region5
    $region4: #{tpu_custom_call.1} parent=1 // pred_region
      _
    $region5: #{tpu_custom_call.1} parent=1 // pred_fallthru
      _
    // Predicated region
    $region6: #{tpu_custom_call.1} parent=1 // pred_check
      _
    $region7: #{tpu_custom_call.1} parent=1 // pred_check_branch
      %17 = sbr.rel (0) target = $region9
    $region8: #{tpu_custom_call.1} parent=1 // pred_region
      _
    $region9: #{tpu_custom_call.1} parent=1 // pred_fallthru
      _
    // Predicated region
    $region10: #{tpu_custom_call.1} parent=1 // pred_check
      _
    $region11: #{tpu_custom_call.1} parent=1 // pred_check_branch
      %19 = sbr.rel (0) target = $region13
    $region12: #{tpu_custom_call.1} parent=1 // pred_region
      _
    $region13: #{tpu_custom_call.1} parent=1 // pred_fallthru
      _
    // Predicated region
    $region14: #{tpu_custom_call.1} parent=1 // pred_check
      _
    $region15: #{tpu_custom_call.1} parent=1 // pred_check_branch
      %21 = sbr.rel (0) target = $region17
    $region16: #{tpu_custom_call.1} parent=1 // pred_region
      _
    $region17: #{tpu_custom_call.1} parent=1 // pred_fallthru
      _
    // Predicated region
    $region18: #{tpu_custom_call.1} parent=1 // pred_check
      _
    $region19: #{tpu_custom_call.1} parent=1 // pred_check_branch
      %23 = sbr.rel (0) target = $region21
    $region20: #{tpu_custom_call.1} parent=1 // pred_region
      _
    $region21: #{tpu_custom_call.1} parent=1 // pred_fallthru
      _
    // Predicated region
    $region22: #{tpu_custom_call.1} parent=1 // pred_check
      _
    $region23: #{tpu_custom_call.1} parent=1 // pred_check_branch
      %25 = sbr.rel (0) target = $region25
    $region24: #{tpu_custom_call.1} parent=1 // pred_region
      _
    $region25: #{tpu_custom_call.1} parent=1 // pred_fallthru
      _
    // Predicated region
    $region26: #{tpu_custom_call.1} parent=1 // pred_check
      _
    $region27: #{tpu_custom_call.1} parent=1 // pred_check_branch
      %27 = sbr.rel (0) target = $region29
    $region28: #{tpu_custom_call.1} parent=1 // pred_region
      _
    $region29: #{tpu_custom_call.1} parent=1 // pred_fallthru
      _
    %v28 = vld [vmem:[%s0] sm:$0xff]
    %v29 = vld [vmem:[%s0 + $0x8] sm:$0xff]
    %v30 = vld [vmem:[%s0 + $0x10] sm:$0xff]
    %v31 = vld [vmem:[%s0 + $0x18] sm:$0xff]
    %v32 = vld [vmem:[%s0 + $0x20] sm:$0xff]
    %v33 = vld [vmem:[%s0 + $0x28] sm:$0xff]
    %v34 = vld [vmem:[%s0 + $0x30] sm:$0xff]
    %v35 = vld [vmem:[%s0 + $0x38] sm:$0xff]
    %v36 = vld [vmem:[%s0 + $0x40] sm:$0xff]
    %v37 = vld [vmem:[%s0 + $0x48] sm:$0xff]
    %v38 = vld [vmem:[%s0 + $0x50] sm:$0xff]
    %v39 = vld [vmem:[%s0 + $0x58] sm:$0xff]
    %v40 = vld [vmem:[%s0 + $0x60] sm:$0xff]
    %v41 = vld [vmem:[%s0 + $0x68] sm:$0xff]
    %v42 = vld [vmem:[%s0 + $0x70] sm:$0xff]
    %v43 = vld [vmem:[%s0 + $0x78] sm:$0xff]
    %v44 = vld [vmem:[%s2] sm:$0xff]
    %v45 = vld [vmem:[%s2 + $0x8] sm:$0xff]
    %v46 = vld [vmem:[%s2 + $0x10] sm:$0xff]
    %v47 = vld [vmem:[%s2 + $0x18] sm:$0xff]
    %v48 = vld [vmem:[%s1] sm:$0xff]
    %v49 = vld [vmem:[%s1 + $0x8] sm:$0xff]
    %v50 = vld [vmem:[%s1 + $0x10] sm:$0xff]
    %v51 = vld [vmem:[%s1 + $0x18] sm:$0xff]
    %v52 = vld [vmem:[%s1 + $0x20] sm:$0xff]
    %v53 = vld [vmem:[%s1 + $0x28] sm:$0xff]
    %v54 = vld [vmem:[%s1 + $0x30] sm:$0xff]
    %v55 = vld [vmem:[%s1 + $0x38] sm:$0xff]
    %v56 = vld [vmem:[%s1 + $0x40] sm:$0xff]
    %v57 = vld [vmem:[%s1 + $0x48] sm:$0xff]
    %v58 = vld [vmem:[%s1 + $0x50] sm:$0xff]
    %v59 = vld [vmem:[%s1 + $0x58] sm:$0xff]
    %v60 = vld [vmem:[%s1 + $0x60] sm:$0xff]
    %v61 = vld [vmem:[%s1 + $0x68] sm:$0xff]
    %v62 = vld [vmem:[%s1 + $0x70] sm:$0xff]
    %v63 = vld [vmem:[%s1 + $0x78] sm:$0xff]
    %v64 = vld [vmem:[%s3] sm:$0xff]
    %v65 = vld [vmem:[%s3 + $0x8] sm:$0xff]
    %v66 = vld [vmem:[%s3 + $0x10] sm:$0xff]
    %v67 = vld [vmem:[%s3 + $0x18] sm:$0xff]
    %vm68 = vcmask 130048
    %v70 = vsel %vm68, %v48, 0
    %v73 = vsel %vm68, %v49, 0
    %v76 = vsel %vm68, %v50, 0
    %v79 = vsel %vm68, %v51, 0
    %v82 = vsel %vm68, %v52, 0
    %v85 = vsel %vm68, %v53, 0
    %v88 = vsel %vm68, %v54, 0
    %v91 = vsel %vm68, %v55, 0
    %v94 = vsel %vm68, %v56, 0
    %v97 = vsel %vm68, %v57, 0
    %v100 = vsel %vm68, %v58, 0
    %v103 = vsel %vm68, %v59, 0
    %v106 = vsel %vm68, %v60, 0
    %v109 = vsel %vm68, %v61, 0
    %v112 = vsel %vm68, %v62, 0
    %v115 = vsel %vm68, %v63, 0
    %v118 = vsel %vm68, %v64, 0
    %v121 = vsel %vm68, %v65, 0
    %v124 = vsel %vm68, %v66, 0
    %v127 = vsel %vm68, %v67, 0
    %129 = vmatprep.subr.mxu0 0.0
    %130 = vmatpush1.xpose.msra.mxu0 %v118
    %131 = vmatprep.subr.mxu0 0.0
    %132 = vmatpush1.xpose.msra.mxu0 %v121
    %133 = vmatprep.subr.mxu0 0.0
    %134 = vmatpush1.xpose.msra.mxu0 %v124
    %135 = vmatprep.subr.mxu0 0.0
    %136 = vmatpush1.xpose.msra.mxu0 %v127
    %137 = vmatprep.subr.mxu0 0.0
    %138 = vmatpush1.xpose.msra.mxu0 0.0
    %139 = vmatprep.subr.mxu0 0.0
    %140 = vmatpush1.xpose.msra.mxu0 0.0
    %141 = vmatprep.subr.mxu0 0.0
    %142 = vmatpush1.xpose.msra.mxu0 0.0
    %143 = vmatprep.subr.mxu0 0.0
    %144 = vmatpush1.xpose.msra.mxu0 0.0
    %145 = vmatprep.subr.mxu0 0.0
    %146 = vmatpush1.xpose.msra.mxu0 0.0
    %147 = vmatprep.subr.mxu0 0.0
    %148 = vmatpush1.xpose.msra.mxu0 0.0
    %149 = vmatprep.subr.mxu0 0.0
    %150 = vmatpush1.xpose.msra.mxu0 0.0
    %151 = vmatprep.subr.mxu0 0.0
    %152 = vmatpush1.xpose.msra.mxu0 0.0
    %153 = vmatprep.subr.mxu0 0.0
    %154 = vmatpush1.xpose.msra.mxu0 0.0
    %155 = vmatprep.subr.mxu0 0.0
    %156 = vmatpush1.xpose.msra.mxu0 0.0
    %157 = vmatprep.subr.mxu0 0.0
    %158 = vmatpush1.xpose.msra.mxu0 0.0
    %159 = vmatprep.subr.mxu0 0.0
    %160 = vmatpush1.xpose.msra.mxu0 0.0
    %161 = vmatprep.subr.mxu0 0.0
    %162 = vmatpush1.xpose.msra.mxu0 0.0
    %163 = vmatprep.subr.mxu0 0.0
    %164 = vmatpush1.xpose.msra.mxu0 0.0
    %165 = vmatprep.subr.mxu0 0.0
    %166 = vmatpush1.xpose.msra.mxu0 0.0
    %167 = vmatprep.subr.mxu0 0.0
    %168 = vmatpush1.xpose.msra.mxu0 0.0
    %169 = vmatprep.subr.mxu0 0.0
    %170 = vmatpush1.xpose.msra.mxu0 0.0
    %171 = vmatprep.subr.mxu0 0.0
    %172 = vmatpush1.xpose.msra.mxu0 0.0
    %173 = vmatprep.subr.mxu0 0.0
    %174 = vmatpush1.xpose.msra.mxu0 0.0
    %175 = vmatprep.subr.mxu0 0.0
    %176 = vmatpush1.xpose.msra.mxu0 0.0
    %177 = vmatprep.subr.mxu0 0.0
    %178 = vmatpush1.xpose.msra.mxu0 0.0
    %179 = vmatprep.subr.mxu0 0.0
    %180 = vmatpush1.xpose.msra.mxu0 0.0
    %181 = vmatprep.subr.mxu0 0.0
    %182 = vmatpush1.xpose.msra.mxu0 0.0
    %183 = vmatprep.subr.mxu0 0.0
    %184 = vmatpush1.xpose.msra.mxu0 0.0
    %185 = vmatprep.subr.mxu0 0.0
    %186 = vmatpush1.xpose.msra.mxu0 0.0
    %187 = vmatprep.subr.mxu0 0.0
    %188 = vmatpush1.xpose.msra.mxu0 0.0
    %189 = vmatprep.subr.mxu0 0.0
    %190 = vmatpush1.xpose.msra.mxu0 0.0
    %191 = vmatprep.subr.mxu0 0.0
    %192 = vmatpush1.xpose.msra.mxu0 0.0
    %193 = vmatprep.mubr.f32.mxu0 0.0
    %194 = vmatmul.mubr.f32.gmra.mrb[0].mxu0 %v70
    %v195 = vpop.f32.mrb[0].mxu0
    %v196 = vadd.f32 0.0, %v195
    %v197 = vpop.f32.mrb[0].mxu0
    %198 = vmatprep.mubr.f32.mxu0 0.0
    %199 = vmatmul.mubr.f32.gmra.mrb[0].mxu0 %v73
    %v200 = vpop.f32.mrb[0].mxu0
    %v201 = vadd.f32 0.0, %v200
    %v202 = vpop.f32.mrb[0].mxu0
    %203 = vmatprep.mubr.f32.mxu0 0.0
    %204 = vmatmul.mubr.f32.gmra.mrb[0].mxu0 %v76
    %v205 = vpop.f32.mrb[0].mxu0
    %v206 = vadd.f32 0.0, %v205
    %v207 = vpop.f32.mrb[0].mxu0
    %208 = vmatprep.mubr.f32.mxu0 0.0
    %209 = vmatmul.mubr.f32.gmra.mrb[0].mxu0 %v79
    %v210 = vpop.f32.mrb[0].mxu0
    %v211 = vadd.f32 0.0, %v210
    %v212 = vpop.f32.mrb[0].mxu0
    %213 = vmatprep.mubr.f32.mxu0 0.0
    %214 = vmatmul.mubr.f32.gmra.mrb[0].mxu0 %v82
    %v215 = vpop.f32.mrb[0].mxu0
    %v216 = vadd.f32 0.0, %v215
    %v217 = vpop.f32.mrb[0].mxu0
    %218 = vmatprep.mubr.f32.mxu0 0.0
    %219 = vmatmul.mubr.f32.gmra.mrb[0].mxu0 %v85
    %v220 = vpop.f32.mrb[0].mxu0
    %v221 = vadd.f32 0.0, %v220
    %v222 = vpop.f32.mrb[0].mxu0
    %223 = vmatprep.mubr.f32.mxu0 0.0
    %224 = vmatmul.mubr.f32.gmra.mrb[0].mxu0 %v88
    %v225 = vpop.f32.mrb[0].mxu0
    %v226 = vadd.f32 0.0, %v225
    %v227 = vpop.f32.mrb[0].mxu0
    %228 = vmatprep.mubr.f32.mxu0 0.0
    %229 = vmatmul.mubr.f32.gmra.mrb[0].mxu0 %v91
    %v230 = vpop.f32.mrb[0].mxu0
    %v231 = vadd.f32 0.0, %v230
    %v232 = vpop.f32.mrb[0].mxu0
    %233 = vmatprep.mubr.f32.mxu0 0.0
    %234 = vmatmul.mubr.f32.gmra.mrb[0].mxu0 %v94
    %v235 = vpop.f32.mrb[0].mxu0
    %v236 = vadd.f32 0.0, %v235
    %v237 = vpop.f32.mrb[0].mxu0
    %238 = vmatprep.mubr.f32.mxu0 0.0
    %239 = vmatmul.mubr.f32.gmra.mrb[0].mxu0 %v97
    %v240 = vpop.f32.mrb[0].mxu0
    %v241 = vadd.f32 0.0, %v240
    %v242 = vpop.f32.mrb[0].mxu0
    %243 = vmatprep.mubr.f32.mxu0 0.0
    %244 = vmatmul.mubr.f32.gmra.mrb[0].mxu0 %v100
    %v245 = vpop.f32.mrb[0].mxu0
    %v246 = vadd.f32 0.0, %v245
    %v247 = vpop.f32.mrb[0].mxu0
    %248 = vmatprep.mubr.f32.mxu0 0.0
    %249 = vmatmul.mubr.f32.gmra.mrb[0].mxu0 %v103
    %v250 = vpop.f32.mrb[0].mxu0
    %v251 = vadd.f32 0.0, %v250
    %v252 = vpop.f32.mrb[0].mxu0
    %253 = vmatprep.mubr.f32.mxu0 0.0
    %254 = vmatmul.mubr.f32.gmra.mrb[0].mxu0 %v106
    %v255 = vpop.f32.mrb[0].mxu0
    %v256 = vadd.f32 0.0, %v255
    %v257 = vpop.f32.mrb[0].mxu0
    %258 = vmatprep.mubr.f32.mxu0 0.0
    %259 = vmatmul.mubr.f32.gmra.mrb[0].mxu0 %v109
    %v260 = vpop.f32.mrb[0].mxu0
    %v261 = vadd.f32 0.0, %v260
    %v262 = vpop.f32.mrb[0].mxu0
    %263 = vmatprep.mubr.f32.mxu0 0.0
    %264 = vmatmul.mubr.f32.gmra.mrb[0].mxu0 %v112
    %v265 = vpop.f32.mrb[0].mxu0
    %v266 = vadd.f32 0.0, %v265
    %v267 = vpop.f32.mrb[0].mxu0
    %268 = vmatprep.mubr.f32.mxu0 0.0
    %269 = vmatmul.mubr.f32.gmra.mrb[0].mxu0 %v115
    %v270 = vpop.f32.mrb[0].mxu0
    %v271 = vadd.f32 0.0, %v270
    %v272 = vpop.f32.mrb[0].mxu0
    %273 = vdwg.mxu0
    %v275 = vsel %vm68, %v28, 0
    %v278 = vsel %vm68, %v29, 0
    %v281 = vsel %vm68, %v30, 0
    %v284 = vsel %vm68, %v31, 0
    %v287 = vsel %vm68, %v32, 0
    %v290 = vsel %vm68, %v33, 0
    %v293 = vsel %vm68, %v34, 0
    %v296 = vsel %vm68, %v35, 0
    %v299 = vsel %vm68, %v36, 0
    %v302 = vsel %vm68, %v37, 0
    %v305 = vsel %vm68, %v38, 0
    %v308 = vsel %vm68, %v39, 0
    %v311 = vsel %vm68, %v40, 0
    %v314 = vsel %vm68, %v41, 0
    %v317 = vsel %vm68, %v42, 0
    %v320 = vsel %vm68, %v43, 0
    %v323 = vsel %vm68, %v44, 0
    %v326 = vsel %vm68, %v45, 0
    %v329 = vsel %vm68, %v46, 0
    %v332 = vsel %vm68, %v47, 0
    %334 = vmatprep.subr.mxu0 0.0
    %335 = vmatpush1.xpose.msra.mxu0 %v323
    %336 = vmatprep.subr.mxu0 0.0
    %337 = vmatpush1.xpose.msra.mxu0 %v326
    %338 = vmatprep.subr.mxu0 0.0
    %339 = vmatpush1.xpose.msra.mxu0 %v329
    %340 = vmatprep.subr.mxu0 0.0
    %341 = vmatpush1.xpose.msra.mxu0 %v332
    %342 = vmatprep.subr.mxu0 0.0
    %343 = vmatpush1.xpose.msra.mxu0 0.0
    %344 = vmatprep.subr.mxu0 0.0
    %345 = vmatpush1.xpose.msra.mxu0 0.0
    %346 = vmatprep.subr.mxu0 0.0
    %347 = vmatpush1.xpose.msra.mxu0 0.0
    %348 = vmatprep.subr.mxu0 0.0
    %349 = vmatpush1.xpose.msra.mxu0 0.0
    %350 = vmatprep.subr.mxu0 0.0
    %351 = vmatpush1.xpose.msra.mxu0 0.0
    %352 = vmatprep.subr.mxu0 0.0
    %353 = vmatpush1.xpose.msra.mxu0 0.0
    %354 = vmatprep.subr.mxu0 0.0
    %355 = vmatpush1.xpose.msra.mxu0 0.0
    %356 = vmatprep.subr.mxu0 0.0
    %357 = vmatpush1.xpose.msra.mxu0 0.0
    %358 = vmatprep.subr.mxu0 0.0
    %359 = vmatpush1.xpose.msra.mxu0 0.0
    %360 = vmatprep.subr.mxu0 0.0
    %361 = vmatpush1.xpose.msra.mxu0 0.0
    %362 = vmatprep.subr.mxu0 0.0
    %363 = vmatpush1.xpose.msra.mxu0 0.0
    %364 = vmatprep.subr.mxu0 0.0
    %365 = vmatpush1.xpose.msra.mxu0 0.0
    %366 = vmatprep.subr.mxu0 0.0
    %367 = vmatpush1.xpose.msra.mxu0 0.0
    %368 = vmatprep.subr.mxu0 0.0
    %369 = vmatpush1.xpose.msra.mxu0 0.0
    %370 = vmatprep.subr.mxu0 0.0
    %371 = vmatpush1.xpose.msra.mxu0 0.0
    %372 = vmatprep.subr.mxu0 0.0
    %373 = vmatpush1.xpose.msra.mxu0 0.0
    %374 = vmatprep.subr.mxu0 0.0
    %375 = vmatpush1.xpose.msra.mxu0 0.0
    %376 = vmatprep.subr.mxu0 0.0
    %377 = vmatpush1.xpose.msra.mxu0 0.0
    %378 = vmatprep.subr.mxu0 0.0
    %379 = vmatpush1.xpose.msra.mxu0 0.0
    %380 = vmatprep.subr.mxu0 0.0
    %381 = vmatpush1.xpose.msra.mxu0 0.0
    %382 = vmatprep.subr.mxu0 0.0
    %383 = vmatpush1.xpose.msra.mxu0 0.0
    %384 = vmatprep.subr.mxu0 0.0
    %385 = vmatpush1.xpose.msra.mxu0 0.0
    %386 = vmatprep.subr.mxu0 0.0
    %387 = vmatpush1.xpose.msra.mxu0 0.0
    %388 = vmatprep.subr.mxu0 0.0
    %389 = vmatpush1.xpose.msra.mxu0 0.0
    %390 = vmatprep.subr.mxu0 0.0
    %391 = vmatpush1.xpose.msra.mxu0 0.0
    %392 = vmatprep.subr.mxu0 0.0
    %393 = vmatpush1.xpose.msra.mxu0 0.0
    %394 = vmatprep.subr.mxu0 0.0
    %395 = vmatpush1.xpose.msra.mxu0 0.0
    %396 = vmatprep.subr.mxu0 0.0
    %397 = vmatpush1.xpose.msra.mxu0 0.0
    %398 = vmatprep.mubr.f32.mxu0 0.0
    %399 = vmatmul.mubr.f32.gmra.mrb[0].mxu0 %v275
    %v400 = vpop.f32.mrb[0].mxu0
    %v401 = vadd.f32 %v196, %v400
    %v402 = vpop.f32.mrb[0].mxu0
    %403 = vmatprep.mubr.f32.mxu0 0.0
    %404 = vmatmul.mubr.f32.gmra.mrb[0].mxu0 %v278
    %v405 = vpop.f32.mrb[0].mxu0
    %v406 = vadd.f32 %v201, %v405
    %v407 = vpop.f32.mrb[0].mxu0
    %408 = vmatprep.mubr.f32.mxu0 0.0
    %409 = vmatmul.mubr.f32.gmra.mrb[0].mxu0 %v281
    %v410 = vpop.f32.mrb[0].mxu0
    %v411 = vadd.f32 %v206, %v410
    %v412 = vpop.f32.mrb[0].mxu0
    %413 = vmatprep.mubr.f32.mxu0 0.0
    %414 = vmatmul.mubr.f32.gmra.mrb[0].mxu0 %v284
    %v415 = vpop.f32.mrb[0].mxu0
    %v416 = vadd.f32 %v211, %v415
    %v417 = vpop.f32.mrb[0].mxu0
    %418 = vmatprep.mubr.f32.mxu0 0.0
    %419 = vmatmul.mubr.f32.gmra.mrb[0].mxu0 %v287
    %v420 = vpop.f32.mrb[0].mxu0
    %v421 = vadd.f32 %v216, %v420
    %v422 = vpop.f32.mrb[0].mxu0
    %423 = vmatprep.mubr.f32.mxu0 0.0
    %424 = vmatmul.mubr.f32.gmra.mrb[0].mxu0 %v290
    %v425 = vpop.f32.mrb[0].mxu0
    %v426 = vadd.f32 %v221, %v425
    %v427 = vpop.f32.mrb[0].mxu0
    %428 = vmatprep.mubr.f32.mxu0 0.0
    %429 = vmatmul.mubr.f32.gmra.mrb[0].mxu0 %v293
    %v430 = vpop.f32.mrb[0].mxu0
    %v431 = vadd.f32 %v226, %v430
    %v432 = vpop.f32.mrb[0].mxu0
    %433 = vmatprep.mubr.f32.mxu0 0.0
    %434 = vmatmul.mubr.f32.gmra.mrb[0].mxu0 %v296
    %v435 = vpop.f32.mrb[0].mxu0
    %v436 = vadd.f32 %v231, %v435
    %v437 = vpop.f32.mrb[0].mxu0
    %438 = vmatprep.mubr.f32.mxu0 0.0
    %439 = vmatmul.mubr.f32.gmra.mrb[0].mxu0 %v299
    %v440 = vpop.f32.mrb[0].mxu0
    %v441 = vadd.f32 %v236, %v440
    %v442 = vpop.f32.mrb[0].mxu0
    %443 = vmatprep.mubr.f32.mxu0 0.0
    %444 = vmatmul.mubr.f32.gmra.mrb[0].mxu0 %v302
    %v445 = vpop.f32.mrb[0].mxu0
    %v446 = vadd.f32 %v241, %v445
    %v447 = vpop.f32.mrb[0].mxu0
    %448 = vmatprep.mubr.f32.mxu0 0.0
    %449 = vmatmul.mubr.f32.gmra.mrb[0].mxu0 %v305
    %v450 = vpop.f32.mrb[0].mxu0
    %v451 = vadd.f32 %v246, %v450
    %v452 = vpop.f32.mrb[0].mxu0
    %453 = vmatprep.mubr.f32.mxu0 0.0
    %454 = vmatmul.mubr.f32.gmra.mrb[0].mxu0 %v308
    %v455 = vpop.f32.mrb[0].mxu0
    %v456 = vadd.f32 %v251, %v455
    %v457 = vpop.f32.mrb[0].mxu0
    %458 = vmatprep.mubr.f32.mxu0 0.0
    %459 = vmatmul.mubr.f32.gmra.mrb[0].mxu0 %v311
    %v460 = vpop.f32.mrb[0].mxu0
    %v461 = vadd.f32 %v256, %v460
    %v462 = vpop.f32.mrb[0].mxu0
    %463 = vmatprep.mubr.f32.mxu0 0.0
    %464 = vmatmul.mubr.f32.gmra.mrb[0].mxu0 %v314
    %v465 = vpop.f32.mrb[0].mxu0
    %v466 = vadd.f32 %v261, %v465
    %v467 = vpop.f32.mrb[0].mxu0
    %468 = vmatprep.mubr.f32.mxu0 0.0
    %469 = vmatmul.mubr.f32.gmra.mrb[0].mxu0 %v317
    %v470 = vpop.f32.mrb[0].mxu0
    %v471 = vadd.f32 %v266, %v470
    %v472 = vpop.f32.mrb[0].mxu0
    %473 = vmatprep.mubr.f32.mxu0 0.0
    %474 = vmatmul.mubr.f32.gmra.mrb[0].mxu0 %v320
    %v475 = vpop.f32.mrb[0].mxu0
    %v476 = vadd.f32 %v271, %v475
    %v477 = vpop.f32.mrb[0].mxu0
    %478 = vdwg.mxu0
    %v479 = vld [vmem:[%s4] sm:$0x1]
    %v481 = vlaneseq
    %v482 = vshrl.u32 %v481, 7
    %v483 = vsub.s32 0, %v482
    %v484 = vrot.slane %v479, %v483
    %v486 = vadd.f32 %v401, %v484
    %v487 = vadd.f32 %v406, %v484
    %v488 = vadd.f32 %v411, %v484
    %v489 = vadd.f32 %v416, %v484
    %v490 = vadd.f32 %v421, %v484
    %v491 = vadd.f32 %v426, %v484
    %v492 = vadd.f32 %v431, %v484
    %v493 = vadd.f32 %v436, %v484
    %v494 = vadd.f32 %v441, %v484
    %v495 = vadd.f32 %v446, %v484
    %v496 = vadd.f32 %v451, %v484
    %v497 = vadd.f32 %v456, %v484
    %v498 = vadd.f32 %v461, %v484
    %v499 = vadd.f32 %v466, %v484
    %v500 = vadd.f32 %v471, %v484
    %v501 = vadd.f32 %v476, %v484
    %v502 = vmax.f32 %v486, 0.0
    %v503 = vmax.f32 %v487, 0.0
    %v504 = vmax.f32 %v488, 0.0
    %v505 = vmax.f32 %v489, 0.0
    %v506 = vmax.f32 %v490, 0.0
    %v507 = vmax.f32 %v491, 0.0
    %v508 = vmax.f32 %v492, 0.0
    %v509 = vmax.f32 %v493, 0.0
    %v510 = vmax.f32 %v494, 0.0
    %v511 = vmax.f32 %v495, 0.0
    %v512 = vmax.f32 %v496, 0.0
    %v513 = vmax.f32 %v497, 0.0
    %v514 = vmax.f32 %v498, 0.0
    %v515 = vmax.f32 %v499, 0.0
    %v516 = vmax.f32 %v500, 0.0
    %v517 = vmax.f32 %v501, 0.0
    %v518 = vld [vmem:[%s5] sm:$0x1]
    %v520 = vlaneseq
    %v521 = vshrl.u32 %v520, 7
    %v522 = vsub.s32 0, %v521
    %v523 = vrot.slane %v518, %v522
    %v525 = vmul.f32 %v502, %v523
    %v526 = vmul.f32 %v503, %v523
    %v527 = vmul.f32 %v504, %v523
    %v528 = vmul.f32 %v505, %v523
    %v529 = vmul.f32 %v506, %v523
    %v530 = vmul.f32 %v507, %v523
    %v531 = vmul.f32 %v508, %v523
    %v532 = vmul.f32 %v509, %v523
    %v533 = vmul.f32 %v510, %v523
    %v534 = vmul.f32 %v511, %v523
    %v535 = vmul.f32 %v512, %v523
    %v536 = vmul.f32 %v513, %v523
    %v537 = vmul.f32 %v514, %v523
    %v538 = vmul.f32 %v515, %v523
    %v539 = vmul.f32 %v516, %v523
    %v540 = vmul.f32 %v517, %v523
    %vm541 = vcmask 261120
    %v542 = vsel %vm541, %v525, 0.0
    %543 = vadd.xlane.f32.xlu0 %v542
    %v544 = vpop.xlane.xlu0 %543
    %v545 = vsel %vm541, %v526, 0.0
    %546 = vadd.xlane.f32.xlu0 %v545
    %v547 = vpop.xlane.xlu0 %546
    %v548 = vsel %vm541, %v527, 0.0
    %549 = vadd.xlane.f32.xlu0 %v548
    %v550 = vpop.xlane.xlu0 %549
    %v551 = vsel %vm541, %v528, 0.0
    %552 = vadd.xlane.f32.xlu0 %v551
    %v553 = vpop.xlane.xlu0 %552
    %v554 = vsel %vm541, %v529, 0.0
    %555 = vadd.xlane.f32.xlu0 %v554
    %v556 = vpop.xlane.xlu0 %555
    %v557 = vsel %vm541, %v530, 0.0
    %558 = vadd.xlane.f32.xlu0 %v557
    %v559 = vpop.xlane.xlu0 %558
    %v560 = vsel %vm541, %v531, 0.0
    %561 = vadd.xlane.f32.xlu0 %v560
    %v562 = vpop.xlane.xlu0 %561
    %v563 = vsel %vm541, %v532, 0.0
    %564 = vadd.xlane.f32.xlu0 %v563
    %v565 = vpop.xlane.xlu0 %564
    %v566 = vsel %vm541, %v533, 0.0
    %567 = vadd.xlane.f32.xlu0 %v566
    %v568 = vpop.xlane.xlu0 %567
    %v569 = vsel %vm541, %v534, 0.0
    %570 = vadd.xlane.f32.xlu0 %v569
    %v571 = vpop.xlane.xlu0 %570
    %v572 = vsel %vm541, %v535, 0.0
    %573 = vadd.xlane.f32.xlu0 %v572
    %v574 = vpop.xlane.xlu0 %573
    %v575 = vsel %vm541, %v536, 0.0
    %576 = vadd.xlane.f32.xlu0 %v575
    %v577 = vpop.xlane.xlu0 %576
    %v578 = vsel %vm541, %v537, 0.0
    %579 = vadd.xlane.f32.xlu0 %v578
    %v580 = vpop.xlane.xlu0 %579
    %v581 = vsel %vm541, %v538, 0.0
    %582 = vadd.xlane.f32.xlu0 %v581
    %v583 = vpop.xlane.xlu0 %582
    %v584 = vsel %vm541, %v539, 0.0
    %585 = vadd.xlane.f32.xlu0 %v584
    %v586 = vpop.xlane.xlu0 %585
    %v587 = vsel %vm541, %v540, 0.0
    %588 = vadd.xlane.f32.xlu0 %v587
    %v589 = vpop.xlane.xlu0 %588
    %s590 = sld [smem:[#allocation2]]
    %v591 = vstv %s590
    %v592 = vadd.f32 %v544, %v591
    %v593 = vadd.f32 %v547, %v591
    %v594 = vadd.f32 %v550, %v591
    %v595 = vadd.f32 %v553, %v591
    %v596 = vadd.f32 %v556, %v591
    %v597 = vadd.f32 %v559, %v591
    %v598 = vadd.f32 %v562, %v591
    %v599 = vadd.f32 %v565, %v591
    %v600 = vadd.f32 %v568, %v591
    %v601 = vadd.f32 %v571, %v591
    %v602 = vadd.f32 %v574, %v591
    %v603 = vadd.f32 %v577, %v591
    %v604 = vadd.f32 %v580, %v591
    %v605 = vadd.f32 %v583, %v591
    %v606 = vadd.f32 %v586, %v591
    %v607 = vadd.f32 %v589, %v591
    %v608 = vxor.u32 %v592, 2147483648
    %v609 = vxor.u32 %v593, 2147483648
    %v610 = vxor.u32 %v594, 2147483648
    %v611 = vxor.u32 %v595, 2147483648
    %v612 = vxor.u32 %v596, 2147483648
    %v613 = vxor.u32 %v597, 2147483648
    %v614 = vxor.u32 %v598, 2147483648
    %v615 = vxor.u32 %v599, 2147483648
    %v616 = vxor.u32 %v600, 2147483648
    %v617 = vxor.u32 %v601, 2147483648
    %v618 = vxor.u32 %v602, 2147483648
    %v619 = vxor.u32 %v603, 2147483648
    %v620 = vxor.u32 %v604, 2147483648
    %v621 = vxor.u32 %v605, 2147483648
    %v622 = vxor.u32 %v606, 2147483648
    %v623 = vxor.u32 %v607, 2147483648
    %v624 = vmul.f32 %v608, 1.442695
    %v625 = vpow.pop %v624
    %v626 = vmul.f32 %v609, 1.442695
    %v627 = vpow.pop %v626
    %v628 = vmul.f32 %v610, 1.442695
    %v629 = vpow.pop %v628
    %v630 = vmul.f32 %v611, 1.442695
    %v631 = vpow.pop %v630
    %v632 = vmul.f32 %v612, 1.442695
    %v633 = vpow.pop %v632
    %v634 = vmul.f32 %v613, 1.442695
    %v635 = vpow.pop %v634
    %v636 = vmul.f32 %v614, 1.442695
    %v637 = vpow.pop %v636
    %v638 = vmul.f32 %v615, 1.442695
    %v639 = vpow.pop %v638
    %v640 = vmul.f32 %v616, 1.442695
    %v641 = vpow.pop %v640
    %v642 = vmul.f32 %v617, 1.442695
    %v643 = vpow.pop %v642
    %v644 = vmul.f32 %v618, 1.442695
    %v645 = vpow.pop %v644
    %v646 = vmul.f32 %v619, 1.442695
    %v647 = vpow.pop %v646
    %v648 = vmul.f32 %v620, 1.442695
    %v649 = vpow.pop %v648
    %v650 = vmul.f32 %v621, 1.442695
    %v651 = vpow.pop %v650
    %v652 = vmul.f32 %v622, 1.442695
    %v653 = vpow.pop %v652
    %v654 = vmul.f32 %v623, 1.442695
    %v655 = vpow.pop %v654
    %v656 = vadd.f32 %v625, 1.0
    %v657 = vadd.f32 %v627, 1.0
    %v658 = vadd.f32 %v629, 1.0
    %v659 = vadd.f32 %v631, 1.0
    %v660 = vadd.f32 %v633, 1.0
    %v661 = vadd.f32 %v635, 1.0
    %v662 = vadd.f32 %v637, 1.0
    %v663 = vadd.f32 %v639, 1.0
    %v664 = vadd.f32 %v641, 1.0
    %v665 = vadd.f32 %v643, 1.0
    %v666 = vadd.f32 %v645, 1.0
    %v667 = vadd.f32 %v647, 1.0
    %v668 = vadd.f32 %v649, 1.0
    %v669 = vadd.f32 %v651, 1.0
    %v670 = vadd.f32 %v653, 1.0
    %v671 = vadd.f32 %v655, 1.0
    %v672 = vrcp.pop %v656
    %v673 = vmul.f32 1.0, %v672
    %v674 = vrcp.pop %v657
    %v675 = vmul.f32 1.0, %v674
    %v676 = vrcp.pop %v658
    %v677 = vmul.f32 1.0, %v676
    %v678 = vrcp.pop %v659
    %v679 = vmul.f32 1.0, %v678
    %v680 = vrcp.pop %v660
    %v681 = vmul.f32 1.0, %v680
    %v682 = vrcp.pop %v661
    %v683 = vmul.f32 1.0, %v682
    %v684 = vrcp.pop %v662
    %v685 = vmul.f32 1.0, %v684
    %v686 = vrcp.pop %v663
    %v687 = vmul.f32 1.0, %v686
    %v688 = vrcp.pop %v664
    %v689 = vmul.f32 1.0, %v688
    %v690 = vrcp.pop %v665
    %v691 = vmul.f32 1.0, %v690
    %v692 = vrcp.pop %v666
    %v693 = vmul.f32 1.0, %v692
    %v694 = vrcp.pop %v667
    %v695 = vmul.f32 1.0, %v694
    %v696 = vrcp.pop %v668
    %v697 = vmul.f32 1.0, %v696
    %v698 = vrcp.pop %v669
    %v699 = vmul.f32 1.0, %v698
    %v700 = vrcp.pop %v670
    %v701 = vmul.f32 1.0, %v700
    %v702 = vrcp.pop %v671
    %v703 = vmul.f32 1.0, %v702
    %v720 = vlaneseq
    %v721 = vand.u32 %v720, 127
    %v722 = vlaneseq
    %v723 = vshrl.u32 %v722, 7
    %v724 = vsub.s32 %v721, %v723
    %v725 = vrot.slane %v673, %v724
    %v726 = vadd.s32 %v721, 4294967288
    %v727 = vlaneseq
    %v728 = vshrl.u32 %v727, 7
    %v729 = vsub.s32 %v726, %v728
    %v730 = vrot.slane %v675, %v729
    %vm731 = vcmask 130112
    %v732 = vsel %vm731, %v730, %v725
    %v733 = vadd.s32 %v721, 4294967280
    %v734 = vlaneseq
    %v735 = vshrl.u32 %v734, 7
    %v736 = vsub.s32 %v733, %v735
    %v737 = vrot.slane %v677, %v736
    %vm738 = vcmask 195712
    %v739 = vsel %vm738, %v737, %v732
    %v740 = vadd.s32 %v721, 4294967272
    %v741 = vlaneseq
    %v742 = vshrl.u32 %v741, 7
    %v743 = vsub.s32 %v740, %v742
    %v744 = vrot.slane %v679, %v743
    %vm745 = vcmask 261312
    %v746 = vsel %vm745, %v744, %v739
    %v747 = vadd.s32 %v721, 4294967264
    %v748 = vlaneseq
    %v749 = vshrl.u32 %v748, 7
    %v750 = vsub.s32 %v747, %v749
    %v751 = vrot.slane %v681, %v750
    %vm752 = vcmask 326912
    %v753 = vsel %vm752, %v751, %v746
    %v754 = vadd.s32 %v721, 4294967256
    %v755 = vlaneseq
    %v756 = vshrl.u32 %v755, 7
    %v757 = vsub.s32 %v754, %v756
    %v758 = vrot.slane %v683, %v757
    %vm759 = vcmask 392512
    %v760 = vsel %vm759, %v758, %v753
    %v761 = vadd.s32 %v721, 4294967248
    %v762 = vlaneseq
    %v763 = vshrl.u32 %v762, 7
    %v764 = vsub.s32 %v761, %v763
    %v765 = vrot.slane %v685, %v764
    %vm766 = vcmask 458112
    %v767 = vsel %vm766, %v765, %v760
    %v768 = vadd.s32 %v721, 4294967240
    %v769 = vlaneseq
    %v770 = vshrl.u32 %v769, 7
    %v771 = vsub.s32 %v768, %v770
    %v772 = vrot.slane %v687, %v771
    %vm773 = vcmask 523712
    %v774 = vsel %vm773, %v772, %v767
    %v775 = vadd.s32 %v721, 4294967232
    %v776 = vlaneseq
    %v777 = vshrl.u32 %v776, 7
    %v778 = vsub.s32 %v775, %v777
    %v779 = vrot.slane %v689, %v778
    %vm780 = vcmask 589312
    %v781 = vsel %vm780, %v779, %v774
    %v782 = vadd.s32 %v721, 4294967224
    %v783 = vlaneseq
    %v784 = vshrl.u32 %v783, 7
    %v785 = vsub.s32 %v782, %v784
    %v786 = vrot.slane %v691, %v785
    %vm787 = vcmask 654912
    %v788 = vsel %vm787, %v786, %v781
    %v789 = vadd.s32 %v721, 4294967216
    %v790 = vlaneseq
    %v791 = vshrl.u32 %v790, 7
    %v792 = vsub.s32 %v789, %v791
    %v793 = vrot.slane %v693, %v792
    %vm794 = vcmask 720512
    %v795 = vsel %vm794, %v793, %v788
    %v796 = vadd.s32 %v721, 4294967208
    %v797 = vlaneseq
    %v798 = vshrl.u32 %v797, 7
    %v799 = vsub.s32 %v796, %v798
    %v800 = vrot.slane %v695, %v799
    %vm801 = vcmask 786112
    %v802 = vsel %vm801, %v800, %v795
    %v803 = vadd.s32 %v721, 4294967200
    %v804 = vlaneseq
    %v805 = vshrl.u32 %v804, 7
    %v806 = vsub.s32 %v803, %v805
    %v807 = vrot.slane %v697, %v806
    %vm808 = vcmask 851712
    %v809 = vsel %vm808, %v807, %v802
    %v810 = vadd.s32 %v721, 4294967192
    %v811 = vlaneseq
    %v812 = vshrl.u32 %v811, 7
    %v813 = vsub.s32 %v810, %v812
    %v814 = vrot.slane %v699, %v813
    %vm815 = vcmask 917312
    %v816 = vsel %vm815, %v814, %v809
    %v817 = vadd.s32 %v721, 4294967184
    %v818 = vlaneseq
    %v819 = vshrl.u32 %v818, 7
    %v820 = vsub.s32 %v817, %v819
    %v821 = vrot.slane %v701, %v820
    %vm822 = vcmask 982912
    %v823 = vsel %vm822, %v821, %v816
    %v824 = vadd.s32 %v721, 4294967176
    %v825 = vlaneseq
    %v826 = vshrl.u32 %v825, 7
    %v827 = vsub.s32 %v824, %v826
    %v828 = vrot.slane %v703, %v827
    %vm829 = vcmask 1048512
    %v830 = vsel %vm829, %v828, %v823
    %832 = vst [vmem:[#allocation3] sm:$0x1] %v830
    // Predicated region
    $region30: #{tpu_custom_call.1} parent=1 // pred_check
      _
    $region31: #{tpu_custom_call.1} parent=1 // pred_check_branch
      %834 = sbr.rel (0) target = $region33
    $region32: #{tpu_custom_call.1} parent=1 // pred_region
      %s836 = ssub.s32 16, 16
      %837 = vsyncadd [#allocation4], %s836
      %s839 = sshll.u32 [#allocation3], 4
      %s840 = int_to_ptr.vmem [resolvable:$true] %s839
      %842 = dma.vmem_to_hbm [thread:$0]  %s840, 16, %s7, [#allocation4]
    $region33: #{tpu_custom_call.1} parent=1 // pred_fallthru
      _
    // Predicated region
    $region34: #{tpu_custom_call.1} parent=1 // pred_check
      _
    $region35: #{tpu_custom_call.1} parent=1 // pred_check_branch
      %844 = sbr.rel (0) target = $region37
    $region36: #{tpu_custom_call.1} parent=1 // pred_region
      %845 = dma.done [#allocation4], 16
    $region37: #{tpu_custom_call.1} parent=1 // pred_fallthru
      _
    %846 = vsyncpa [#allocation4], 1

</llo_original>
